<compile_context>
chip_gen: v7x
topology: tpu7x:2x2x1
jax: 0.10.0
libtpu: 0.0.40
codegen_flags: <defaults>
</compile_context>

<pallas_src>
import math

import jax
import jax.numpy as jnp
from jax import lax
from jax.experimental import pallas as pl
from jax.experimental.pallas import tpu as pltpu


def _round_up(n, m):
    return ((n + m - 1) // m) * m


def _one_hidden_layer_kernel(x_ref, w1_ref, b1_ref, w2_ref, b2_ref, o_ref):
    # x_ref : [TB, D]  (VMEM)
    # w1_ref: [H, D]   (torch layout, no wrapper transpose)
    # b1_ref: [1, H]
    # w2_ref: [1, H]   (torch layout: l2.weight)
    # b2_ref: [1]      (SMEM scalar)
    # o_ref : [1, TB]  (lane-dense: batch on lanes)
    x = x_ref[...]

    # --- Linear 1: x @ w1.T  (MXU) ---
    h = lax.dot_general(
        x, w1_ref[...],
        dimension_numbers=(((1,), (1,)), ((), ())),
        preferred_element_type=jnp.float32,
    ) + b1_ref[...]                                   # [TB, H]

    # --- SiLU (VPU + EUP) ---
    h = h * jax.nn.sigmoid(h)

    # --- Dropout (eval mode: identity) ---

    # --- Linear 2 (out_features=1): VPU mul + lane reduce, not an N=1 matmul ---
    y = jnp.sum(h * w2_ref[...], axis=-1) + b2_ref[0]  # [TB]

    # --- Dropout (eval mode: identity) ---

    # --- Sigmoid + lane-dense store ---
    o_ref[...] = jax.nn.sigmoid(y)[None, :].astype(o_ref.dtype)


def one_hidden_layer_forward(x, w1, b1, w2, b2, *, max_tile=512):
    """x: [B, D]; w1: [H, D]; b1: [H]; w2: [1, H]; b2: [1]. Returns [B, 1]."""
    B, D = x.shape
    H = w1.shape[0]

    # Batch tile: whole (8-aligned) batch for small B, else 512-row tiles
    # (multiple of 128 -> lane-dense output blocks remain legal).
    if B <= max_tile:
        TB = _round_up(B, 8)
    else:
        TB = max_tile
    B_pad = _round_up(B, TB)
    G = B_pad // TB
    if B_pad != B:
        x = jnp.pad(x, ((0, B_pad - B), (0, 0)))

    b1_2d = b1.reshape(1, H)
    b2_1d = b2.reshape(1)

    # Deeper buffering on the streamed input once the grid is long enough
    # (mainly for v5e, where HBM bandwidth is the binding constraint).
    if G >= 3:
        x_spec = pl.BlockSpec((TB, D), lambda i: (i, 0),
                              pipeline_mode=pl.Buffered(3))
    else:
        x_spec = pl.BlockSpec((TB, D), lambda i: (i, 0))

    out = pl.pallas_call(
        _one_hidden_layer_kernel,
        out_shape=jax.ShapeDtypeStruct((1, B_pad), jnp.float32),
        grid_spec=pltpu.PrefetchScalarGridSpec(
            num_scalar_prefetch=0,
            grid=(G,),
            in_specs=[
                x_spec,                                            # x tiles
                pl.BlockSpec((H, D), lambda i: (0, 0)),            # w1 (resident)
                pl.BlockSpec((1, H), lambda i: (0, 0)),            # b1 (resident)
                pl.BlockSpec((1, H), lambda i: (0, 0)),            # w2 (resident)
                pl.BlockSpec(memory_space=pltpu.MemorySpace.SMEM), # b2 scalar
            ],
            out_specs=pl.BlockSpec((1, TB), lambda i: (0, i)),
        ),
        compiler_params=pltpu.CompilerParams(
            dimension_semantics=("parallel",),  # batch tiles are independent
        ),
    )(x, w1, b1_2d, w2, b2_1d)

    # Undo lane-dense layout + padding: [1, B_pad] -> [B, 1].
    return out.reshape(B_pad)[:B].reshape(B, 1)


def init_params(key, input_dim, hidden_nodes):
    """Deterministic xavier_normal_ init, gain = calculate_gain('leaky_relu', 0.2)."""
    gain = math.sqrt(2.0 / (1.0 + 0.2 ** 2))
    k1, k2, k3, k4 = jax.random.split(key, 4)

    # l1: Linear(input_dim, hidden_nodes) -> weight [H, D], bias [H]
    std1 = gain * math.sqrt(2.0 / (input_dim + hidden_nodes))
    w1 = std1 * jax.random.normal(k1, (hidden_nodes, input_dim), jnp.float32)
    bound1 = 1.0 / math.sqrt(input_dim)
    b1 = jax.random.uniform(k2, (hidden_nodes,), jnp.float32, -bound1, bound1)

    # l2: Linear(hidden_nodes, 1) -> weight [1, H], bias [1]
    std2 = gain * math.sqrt(2.0 / (hidden_nodes + 1))
    w2 = std2 * jax.random.normal(k3, (1, hidden_nodes), jnp.float32)
    bound2 = 1.0 / math.sqrt(hidden_nodes)
    b2 = jax.random.uniform(k4, (1,), jnp.float32, -bound2, bound2)

    return w1, b1, w2, b2


if __name__ == "__main__":
    key = jax.random.PRNGKey(0)
    kx, kp = jax.random.split(key)

    batch = 8
    input_dim = 16
    hidden_nodes = 32
    dropout_rate = 0.5  # unused at eval time

    x = jax.random.normal(kx, (batch, input_dim), jnp.float32)
    w1, b1, w2, b2 = init_params(kp, input_dim, hidden_nodes)

    out = one_hidden_layer_forward(x, w1, b1, w2, b2)
    out = jax.block_until_ready(out)

    # Pure-JAX reference check (eval-mode dropout).
    h_ref = x @ w1.T + b1
    h_ref = h_ref * jax.nn.sigmoid(h_ref)
    y_ref = jax.nn.sigmoid(h_ref @ w2.T + b2)
    assert out.shape == (batch, 1)
    assert jnp.allclose(out, y_ref, atol=1e-5, rtol=1e-5)

    print("KERNEL_OK")
</pallas_src>

<mosaic_0001>
module attributes {stable_mosaic.version = 11 : i64} {
  func.func @_one_hidden_layer_kernel(%arg0: i32, %arg1: memref<8x16xf32, #tpu.memory_space<vmem>>, %arg2: memref<32x16xf32, #tpu.memory_space<vmem>>, %arg3: memref<1x32xf32, #tpu.memory_space<vmem>>, %arg4: memref<1x32xf32, #tpu.memory_space<vmem>>, %arg5: memref<1xf32, #tpu.memory_space<smem>>, %arg6: memref<1x8xf32, #tpu.memory_space<vmem>>) attributes {dimension_semantics = [#tpu.dimension_semantics<parallel>], iteration_bounds = array<i64: 1>, scalar_prefetch = 0 : i64, scratch_operands = 0 : i64, tpu.core_type = #tpu.core_type<tc>, window_params = [{transform_indices = @transform_0, window_bounds = array<i64: 8, 16>}, {pipeline_mode = #tpu.pipeline_mode<synchronous>, transform_indices = @transform_1, window_bounds = array<i64: 32, 16>}, {pipeline_mode = #tpu.pipeline_mode<synchronous>, transform_indices = @transform_2, window_bounds = array<i64: 1, 32>}, {pipeline_mode = #tpu.pipeline_mode<synchronous>, transform_indices = @transform_3, window_bounds = array<i64: 1, 32>}, {transform_indices = @transform_4, window_bounds = array<i64: 1>}, {transform_indices = @transform_5, window_bounds = array<i64: 1, 8>}]} {
    %c0 = arith.constant 0 : index
    %c0_0 = arith.constant 0 : index
    %0 = vector.load %arg1[%c0, %c0_0] : memref<8x16xf32, #tpu.memory_space<vmem>>, vector<8x16xf32>
    %c0_1 = arith.constant 0 : index
    %c0_2 = arith.constant 0 : index
    %1 = vector.load %arg2[%c0_1, %c0_2] : memref<32x16xf32, #tpu.memory_space<vmem>>, vector<32x16xf32>
    %cst = arith.constant dense<0.000000e+00> : vector<8x32xf32>
    %2 = tpu.matmul %0, %1, %cst {dimension_numbers = #tpu.dot_dimension_numbers<[1], [1], [0], [0], [0, 0, 1, 0], [], []>} : vector<8x16xf32>, vector<32x16xf32>, vector<8x32xf32> -> vector<8x32xf32>
    %c0_3 = arith.constant 0 : index
    %c0_4 = arith.constant 0 : index
    %3 = vector.load %arg3[%c0_3, %c0_4] : memref<1x32xf32, #tpu.memory_space<vmem>>, vector<1x32xf32>
    %4 = vector.broadcast %3 : vector<1x32xf32> to vector<8x32xf32>
    %5 = arith.addf %2, %4 : vector<8x32xf32>
    %6 = arith.negf %5 : vector<8x32xf32>
    %7 = math.exp %6 : vector<8x32xf32>
    %cst_5 = arith.constant 1.000000e+00 : f32
    %8 = vector.broadcast %cst_5 : f32 to vector<8x32xf32>
    %9 = arith.addf %8, %7 : vector<8x32xf32>
    %10 = arith.divf %8, %9 : vector<8x32xf32>
    %11 = arith.mulf %5, %10 : vector<8x32xf32>
    %c0_6 = arith.constant 0 : index
    %c0_7 = arith.constant 0 : index
    %12 = vector.load %arg4[%c0_6, %c0_7] : memref<1x32xf32, #tpu.memory_space<vmem>>, vector<1x32xf32>
    %13 = vector.broadcast %12 : vector<1x32xf32> to vector<8x32xf32>
    %14 = arith.mulf %11, %13 : vector<8x32xf32>
    %cst_8 = arith.constant dense<0.000000e+00> : vector<8xf32>
    %15 = vector.multi_reduction <add>, %14, %cst_8 [1] : vector<8x32xf32> to vector<8xf32>
    %c0_9 = arith.constant 0 : index
    %16 = memref.load %arg5[%c0_9] : memref<1xf32, #tpu.memory_space<smem>>
    %17 = vector.broadcast %16 : f32 to vector<8xf32>
    %18 = arith.addf %15, %17 : vector<8xf32>
    %19 = arith.negf %18 : vector<8xf32>
    %20 = math.exp %19 : vector<8xf32>
    %cst_10 = arith.constant 1.000000e+00 : f32
    %21 = vector.broadcast %cst_10 : f32 to vector<8xf32>
    %22 = arith.addf %21, %20 : vector<8xf32>
    %23 = arith.divf %21, %22 : vector<8xf32>
    %24 = vector.shape_cast %23 : vector<8xf32> to vector<1x8xf32>
    %c0_11 = arith.constant 0 : index
    %c0_12 = arith.constant 0 : index
    %25 = vector.load %arg6[%c0_11, %c0_12] : memref<1x8xf32, #tpu.memory_space<vmem>>, vector<1x8xf32>
    tpu.vector_store %arg6[%c0_11, %c0_12], %24 {strides = array<i32>} : memref<1x8xf32, #tpu.memory_space<vmem>>, vector<1x8xf32>,
    return
  }
  func.func @transform_0(%arg0: i32) -> (i32, i32) {
    %c0_i32 = arith.constant 0 : i32
    %c0_i32_0 = arith.constant 0 : i32
    return %arg0, %c0_i32 : i32, i32
  }
  func.func @transform_1(%arg0: i32) -> (i32, i32) {
    %c0_i32 = arith.constant 0 : i32
    %c0_i32_0 = arith.constant 0 : i32
    %c0_i32_1 = arith.constant 0 : i32
    return %c0_i32, %c0_i32_0 : i32, i32
  }
  func.func @transform_2(%arg0: i32) -> (i32, i32) {
    %c0_i32 = arith.constant 0 : i32
    %c0_i32_0 = arith.constant 0 : i32
    %c0_i32_1 = arith.constant 0 : i32
    return %c0_i32, %c0_i32_0 : i32, i32
  }
  func.func @transform_3(%arg0: i32) -> (i32, i32) {
    %c0_i32 = arith.constant 0 : i32
    %c0_i32_0 = arith.constant 0 : i32
    %c0_i32_1 = arith.constant 0 : i32
    return %c0_i32, %c0_i32_0 : i32, i32
  }
  func.func @transform_4(%arg0: i32) -> i32 {
    %c0_i32 = arith.constant 0 : i32
    %c0_i32_0 = arith.constant 0 : i32
    return %c0_i32 : i32
  }
  func.func @transform_5(%arg0: i32) -> (i32, i32) {
    %c0_i32 = arith.constant 0 : i32
    %c0_i32_0 = arith.constant 0 : i32
    return %c0_i32, %arg0 : i32, i32
  }
}

</mosaic_0001>

<llo_original>
// kernel: tpu_custom_call.1
$region0: #{tpu_custom_call.1}
  #allocation0 [shape = 'u32[]', space=smem, size = 0x4, offset = 0x4, fixed_abs, tag = 'smem constant byte address 0x4 - core index']
  #allocation1 [shape = 'u32[144,128]{1,0:T(1,128)}', space=vmem, size = 0x12000, scoped, tag = 'internal scratch']
  #allocation2 [shape = 'f32[1]{0:T(128)S(6)}', space=smem, size = 0x200, scoped, tag = 'scoped memory for tpu_custom_call.1']
  %s0 = inlined_call_operand.vmem [shape: f32[8,16], index: 0, kind: input, shape index: {}]
  %s1 = inlined_call_operand.vmem [shape: f32[32,16], index: 1, kind: input, shape index: {}]
  %s2 = inlined_call_operand.vmem [shape: f32[1,32], index: 2, kind: input, shape index: {}]
  %s3 = inlined_call_operand.vmem [shape: f32[1,32], index: 3, kind: input, shape index: {}]
  %s4 = inlined_call_operand.<no memory space> [shape: f32[1], index: 4, kind: input, shape index: {}]
  %s5 = inlined_call_operand.hbm [shape: f32[1,8], index: 5, kind: output, shape index: {}]
  %s6 = sld [smem:[#allocation0]]
  $region30: #{tpu_custom_call.1} parent=0
    _
  %s8 = ssub.s32 1, %s6
  %s9 = scalar_select 0, %s8, %s6
  %10 = sst [smem:[#allocation2]] %s4
  $region1: #{tpu_custom_call.1} parent=0
    #allocation3 [shape = 'u8[512]{0}', space=vmem, size = 0x400, scoped, tag = 'output window, operand 0, single buffered']
    #allocation4 [shape = 's32[1]{0}', space=sflag, size = 0x4, scoped, tag = 'scoped memory for tpu_custom_call.1']
    %11 = vsyncpa [#allocation4], 0
    // Predicated region
    $region2: #{tpu_custom_call.1} parent=1 // pred_check
      _
    $region3: #{tpu_custom_call.1} parent=1 // pred_check_branch
      %13 = sbr.rel (0) target = $region5
    $region4: #{tpu_custom_call.1} parent=1 // pred_region
      _
    $region5: #{tpu_custom_call.1} parent=1 // pred_fallthru
      _
    // Predicated region
    $region6: #{tpu_custom_call.1} parent=1 // pred_check
      _
    $region7: #{tpu_custom_call.1} parent=1 // pred_check_branch
      %15 = sbr.rel (0) target = $region9
    $region8: #{tpu_custom_call.1} parent=1 // pred_region
      _
    $region9: #{tpu_custom_call.1} parent=1 // pred_fallthru
      _
    // Predicated region
    $region10: #{tpu_custom_call.1} parent=1 // pred_check
      _
    $region11: #{tpu_custom_call.1} parent=1 // pred_check_branch
      %17 = sbr.rel (0) target = $region13
    $region12: #{tpu_custom_call.1} parent=1 // pred_region
      _
    $region13: #{tpu_custom_call.1} parent=1 // pred_fallthru
      _
    // Predicated region
    $region14: #{tpu_custom_call.1} parent=1 // pred_check
      _
    $region15: #{tpu_custom_call.1} parent=1 // pred_check_branch
      %19 = sbr.rel (0) target = $region17
    $region16: #{tpu_custom_call.1} parent=1 // pred_region
      _
    $region17: #{tpu_custom_call.1} parent=1 // pred_fallthru
      _
    // Predicated region
    $region18: #{tpu_custom_call.1} parent=1 // pred_check
      _
    $region19: #{tpu_custom_call.1} parent=1 // pred_check_branch
      %21 = sbr.rel (0) target = $region21
    $region20: #{tpu_custom_call.1} parent=1 // pred_region
      _
    $region21: #{tpu_custom_call.1} parent=1 // pred_fallthru
      _
    %v22 = vld [vmem:[%s0] sm:$0xff]
    %v23 = vld [vmem:[%s1] sm:$0xff]
    %v24 = vld [vmem:[%s1 + $0x8] sm:$0xff]
    %v25 = vld [vmem:[%s1 + $0x10] sm:$0xff]
    %v26 = vld [vmem:[%s1 + $0x18] sm:$0xff]
    %v27 = vld [vmem:[%s2] sm:$0x1]
    %v29 = vlaneseq
    %v30 = vshrl.u32 %v29, 7
    %v31 = vsub.s32 0, %v30
    %v32 = vrot.slane %v27, %v31
    %vm34 = vcmask 130048
    %v36 = vsel %vm34, %v22, 0
    %v39 = vsel %vm34, %v23, 0
    %v42 = vsel %vm34, %v24, 0
    %v45 = vsel %vm34, %v25, 0
    %v48 = vsel %vm34, %v26, 0
    %50 = vmatprep.subr.mxu0 0.0
    %51 = vmatpush1.xpose.msra.mxu0 %v39
    %52 = vmatprep.subr.mxu0 0.0
    %53 = vmatpush1.xpose.msra.mxu0 %v42
    %54 = vmatprep.subr.mxu0 0.0
    %55 = vmatpush1.xpose.msra.mxu0 %v45
    %56 = vmatprep.subr.mxu0 0.0
    %57 = vmatpush1.xpose.msra.mxu0 %v48
    %58 = vmatprep.subr.mxu0 0.0
    %59 = vmatpush1.xpose.msra.mxu0 0.0
    %60 = vmatprep.subr.mxu0 0.0
    %61 = vmatpush1.xpose.msra.mxu0 0.0
    %62 = vmatprep.subr.mxu0 0.0
    %63 = vmatpush1.xpose.msra.mxu0 0.0
    %64 = vmatprep.subr.mxu0 0.0
    %65 = vmatpush1.xpose.msra.mxu0 0.0
    %66 = vmatprep.subr.mxu0 0.0
    %67 = vmatpush1.xpose.msra.mxu0 0.0
    %68 = vmatprep.subr.mxu0 0.0
    %69 = vmatpush1.xpose.msra.mxu0 0.0
    %70 = vmatprep.subr.mxu0 0.0
    %71 = vmatpush1.xpose.msra.mxu0 0.0
    %72 = vmatprep.subr.mxu0 0.0
    %73 = vmatpush1.xpose.msra.mxu0 0.0
    %74 = vmatprep.subr.mxu0 0.0
    %75 = vmatpush1.xpose.msra.mxu0 0.0
    %76 = vmatprep.subr.mxu0 0.0
    %77 = vmatpush1.xpose.msra.mxu0 0.0
    %78 = vmatprep.subr.mxu0 0.0
    %79 = vmatpush1.xpose.msra.mxu0 0.0
    %80 = vmatprep.subr.mxu0 0.0
    %81 = vmatpush1.xpose.msra.mxu0 0.0
    %82 = vmatprep.subr.mxu0 0.0
    %83 = vmatpush1.xpose.msra.mxu0 0.0
    %84 = vmatprep.subr.mxu0 0.0
    %85 = vmatpush1.xpose.msra.mxu0 0.0
    %86 = vmatprep.subr.mxu0 0.0
    %87 = vmatpush1.xpose.msra.mxu0 0.0
    %88 = vmatprep.subr.mxu0 0.0
    %89 = vmatpush1.xpose.msra.mxu0 0.0
    %90 = vmatprep.subr.mxu0 0.0
    %91 = vmatpush1.xpose.msra.mxu0 0.0
    %92 = vmatprep.subr.mxu0 0.0
    %93 = vmatpush1.xpose.msra.mxu0 0.0
    %94 = vmatprep.subr.mxu0 0.0
    %95 = vmatpush1.xpose.msra.mxu0 0.0
    %96 = vmatprep.subr.mxu0 0.0
    %97 = vmatpush1.xpose.msra.mxu0 0.0
    %98 = vmatprep.subr.mxu0 0.0
    %99 = vmatpush1.xpose.msra.mxu0 0.0
    %100 = vmatprep.subr.mxu0 0.0
    %101 = vmatpush1.xpose.msra.mxu0 0.0
    %102 = vmatprep.subr.mxu0 0.0
    %103 = vmatpush1.xpose.msra.mxu0 0.0
    %104 = vmatprep.subr.mxu0 0.0
    %105 = vmatpush1.xpose.msra.mxu0 0.0
    %106 = vmatprep.subr.mxu0 0.0
    %107 = vmatpush1.xpose.msra.mxu0 0.0
    %108 = vmatprep.subr.mxu0 0.0
    %109 = vmatpush1.xpose.msra.mxu0 0.0
    %110 = vmatprep.subr.mxu0 0.0
    %111 = vmatpush1.xpose.msra.mxu0 0.0
    %112 = vmatprep.subr.mxu0 0.0
    %113 = vmatpush1.xpose.msra.mxu0 0.0
    %114 = vmatprep.mubr.f32.mxu0 0.0
    %115 = vmatmul.mubr.f32.gmra.mrb[0].mxu0 %v36
    %v116 = vpop.f32.mrb[0].mxu0
    %v117 = vadd.f32 %v32, %v116
    %v118 = vpop.f32.mrb[0].mxu0
    %119 = vdwg.mxu0
    %v120 = vxor.u32 %v117, 2147483648
    %v121 = vmul.f32 %v120, 1.442695
    %v122 = vpow.pop %v121
    %v123 = vadd.f32 %v122, 1.0
    %v124 = vrcp.pop %v123
    %v125 = vmul.f32 1.0, %v124
    %v126 = vmul.f32 %v117, %v125
    %v127 = vld [vmem:[%s3] sm:$0x1]
    %v129 = vlaneseq
    %v130 = vshrl.u32 %v129, 7
    %v131 = vsub.s32 0, %v130
    %v132 = vrot.slane %v127, %v131
    %v134 = vmul.f32 %v126, %v132
    %vm135 = vcmask 261120
    %v136 = vsel %vm135, %v134, 0.0
    %137 = vadd.xlane.f32.xlu0 %v136
    %v138 = vpop.xlane.xlu0 %137
    %s139 = sld [smem:[#allocation2]]
    %v140 = vstv %s139
    %v141 = vadd.f32 %v138, %v140
    %v142 = vxor.u32 %v141, 2147483648
    %v143 = vmul.f32 %v142, 1.442695
    %v144 = vpow.pop %v143
    %v145 = vadd.f32 %v144, 1.0
    %v146 = vrcp.pop %v145
    %v147 = vmul.f32 1.0, %v146
    %v149 = vlaneseq
    %v150 = vand.u32 %v149, 127
    %v151 = vlaneseq
    %v152 = vshrl.u32 %v151, 7
    %v153 = vsub.s32 %v150, %v152
    %v154 = vrot.slane %v147, %v153
    %vm156 = vcmask 57344
    %157 = vst.msk [vmem:[#allocation3] sm:$0x1] %vm156, %v154
    // Predicated region
    $region22: #{tpu_custom_call.1} parent=1 // pred_check
      _
    $region23: #{tpu_custom_call.1} parent=1 // pred_check_branch
      %159 = sbr.rel (0) target = $region25
    $region24: #{tpu_custom_call.1} parent=1 // pred_region
      %s161 = ssub.s32 16, 16
      %162 = vsyncadd [#allocation4], %s161
      %s164 = sshll.u32 [#allocation3], 4
      %s165 = int_to_ptr.vmem [resolvable:$true] %s164
      %167 = dma.vmem_to_hbm [thread:$0]  %s165, 16, %s5, [#allocation4]
    $region25: #{tpu_custom_call.1} parent=1 // pred_fallthru
      _
    // Predicated region
    $region26: #{tpu_custom_call.1} parent=1 // pred_check
      _
    $region27: #{tpu_custom_call.1} parent=1 // pred_check_branch
      %169 = sbr.rel (0) target = $region29
    $region28: #{tpu_custom_call.1} parent=1 // pred_region
      %170 = dma.done [#allocation4], 16
    $region29: #{tpu_custom_call.1} parent=1 // pred_fallthru
      _
    %171 = vsyncpa [#allocation4], 1

</llo_original>
